<compile_context>
chip_gen: v7x
topology: tpu7x:2x2x1
jax: 0.10.0
libtpu: 0.0.40
codegen_flags: <defaults>
</compile_context>

<pallas_src>
import functools

import jax
import jax.numpy as jnp
from jax.experimental import pallas as pl
from jax.experimental.pallas import tpu as pltpu

_FUSE_MAX_M = 4096                 # fuse InstanceNorm into GEMM epilogue up to this M
_VMEM_LIMIT = 48 * 1024 * 1024     # raise scoped VMEM (v5e default is only 16 MiB)


# ----------------------------- GEMM kernel ----------------------------------

def _gemm_kernel(*refs, act, fuse_norm):
    if fuse_norm:
        a_ref, b_ref, bias_ref, g_ref, bt_ref, o_ref, acc_ref = refs
    else:
        a_ref, b_ref, bias_ref, o_ref, acc_ref = refs
        g_ref = bt_ref = None
    k = pl.program_id(1)

    @pl.when(k == 0)
    def _():
        acc_ref[...] = jnp.zeros_like(acc_ref)

    acc_ref[...] += jnp.dot(a_ref[...], b_ref[...],
                            preferred_element_type=jnp.float32)

    @pl.when(k == pl.num_programs(1) - 1)
    def _():
        y = acc_ref[...] + bias_ref[...]
        if fuse_norm:
            # InstanceNorm over the rows of this tile (tile == whole sample).
            mean = jnp.mean(y, axis=0, keepdims=True)
            yc = y - mean
            var = jnp.mean(yc * yc, axis=0, keepdims=True)
            y = yc * jax.lax.rsqrt(var + 1e-5) * g_ref[...] + bt_ref[...]
        if act == "leaky":
            y = jnp.where(y > 0, y, 0.2 * y)
        elif act == "relu":
            y = jnp.maximum(y, 0.0)
        elif act == "tanh":
            y = jnp.tanh(y)
        o_ref[...] = y.astype(o_ref.dtype)


def _choose_tiles(M, K, Nc, fuse_norm):
    # K tile: keep full unless large and 128-divisible.
    tk = K
    if K % 128 == 0:
        while tk > 2048 and tk % 2 == 0:
            tk //= 2
        if K % tk:
            tk = K
    if fuse_norm or M <= 4096:
        return M, tk
    # Large-M layers: big tiles to amortize per-step overhead, bounded VMEM.
    tm = 4096
    per_row = 2 * tk * 2 + 4 * Nc + 4 * Nc     # dbl-buffered bf16 A + f32 acc + out
    while tm > 512 and tm * per_row > 8 * 1024 * 1024:
        tm //= 2
    return tm, tk


def _gemm(a, b, bias, *, act="none", gamma=None, beta=None,
          out_dtype=jnp.bfloat16):
    """(M, K) @ (K, Nc) + bias, fused activation (and optional fused
    InstanceNorm over rows).  bf16 MXU inputs, f32 accumulation."""
    M, K = a.shape
    Nc = b.shape[1]
    fuse_norm = gamma is not None
    tm, tk = _choose_tiles(M, K, Nc, fuse_norm)
    Mp = -(-M // tm) * tm
    if Mp != M:
        a = jnp.pad(a, ((0, Mp - M), (0, 0)))

    in_specs = [
        pl.BlockSpec((tm, tk), lambda i, k: (i, k)),
        pl.BlockSpec((tk, Nc), lambda i, k: (k, 0)),
        pl.BlockSpec((1, Nc), lambda i, k: (0, 0)),
    ]
    args = [a.astype(jnp.bfloat16), b.astype(jnp.bfloat16),
            bias.reshape(1, Nc).astype(jnp.float32)]
    if fuse_norm:
        in_specs += [pl.BlockSpec((1, Nc), lambda i, k: (0, 0)),
                     pl.BlockSpec((1, Nc), lambda i, k: (0, 0))]
        args += [gamma.reshape(1, Nc).astype(jnp.float32),
                 beta.reshape(1, Nc).astype(jnp.float32)]

    out = pl.pallas_call(
        functools.partial(_gemm_kernel, act=act, fuse_norm=fuse_norm),
        out_shape=jax.ShapeDtypeStruct((Mp, Nc), out_dtype),
        grid_spec=pltpu.PrefetchScalarGridSpec(
            num_scalar_prefetch=0,
            grid=(Mp // tm, K // tk),
            in_specs=in_specs,
            out_specs=pl.BlockSpec((tm, Nc), lambda i, k: (i, 0)),
            scratch_shapes=[pltpu.VMEM((tm, Nc), jnp.float32)]),
        compiler_params=pltpu.CompilerParams(
            dimension_semantics=("parallel", "arbitrary"),
            vmem_limit_bytes=_VMEM_LIMIT),
    )(*args)
    return out[:M] if Mp != M else out


# ------------------- InstanceNorm + activation (+dropout) -------------------

def _instnorm_kernel(*refs, act, dropout):
    if dropout:
        x_ref, g_ref, b_ref, m_ref, o_ref = refs
    else:
        x_ref, g_ref, b_ref, o_ref = refs
        m_ref = None
    x = x_ref[0].astype(jnp.float32)                    # (S, tc)
    mean = jnp.mean(x, axis=0, keepdims=True)
    xc = x - mean
    var = jnp.mean(xc * xc, axis=0, keepdims=True)      # biased var (torch IN)
    y = xc * jax.lax.rsqrt(var + 1e-5) * g_ref[...] + b_ref[...]
    if act == "relu":
        y = jnp.maximum(y, 0.0)
    else:                                               # leaky relu, slope 0.2
        y = jnp.where(y > 0, y, 0.2 * y)
    if dropout:
        y = y * m_ref[0].astype(jnp.float32)
    o_ref[0] = y.astype(o_ref.dtype)


def _instance_norm_act(y, gamma, beta, *, act, drop_mask=None):
    """InstanceNorm2d(affine=True) + activation (+ dropout).  y: (N,H,W,C)."""
    N, H, W, C = y.shape
    S = H * W
    tc = C if C <= 128 else 128
    if C % tc:
        tc = C
    x3 = y.reshape(N, S, C)
    dropout = drop_mask is not None
    in_specs = [pl.BlockSpec((1, S, tc), lambda n, c: (n, 0, c)),
                pl.BlockSpec((1, tc), lambda n, c: (0, c)),
                pl.BlockSpec((1, tc), lambda n, c: (0, c))]
    args = [x3, gamma.reshape(1, C).astype(jnp.float32),
            beta.reshape(1, C).astype(jnp.float32)]
    if dropout:
        in_specs.append(pl.BlockSpec((1, S, tc), lambda n, c: (n, 0, c)))
        args.append(drop_mask.reshape(N, S, C))
    out = pl.pallas_call(
        functools.partial(_instnorm_kernel, act=act, dropout=dropout),
        out_shape=jax.ShapeDtypeStruct((N, S, C), y.dtype),
        grid_spec=pltpu.PrefetchScalarGridSpec(
            num_scalar_prefetch=0,
            grid=(N, C // tc),
            in_specs=in_specs,
            out_specs=pl.BlockSpec((1, S, tc), lambda n, c: (n, 0, c))),
        compiler_params=pltpu.CompilerParams(
            dimension_semantics=("parallel", "parallel"),
            vmem_limit_bytes=_VMEM_LIMIT),
    )(*args)
    return out.reshape(N, H, W, C)


# ------------------------------ conv wrappers --------------------------------

def conv2d_down(x, w, bias, *, act, gamma=None, beta=None,
                out_dtype=jnp.bfloat16):
    """Conv2d(k=4, s=2, p=1, padding_mode='reflect').
    x: (N,H,W,Cin) NHWC, w: (Cout,Cin,4,4) torch layout."""
    N, H, W, Cin = x.shape
    Cout = w.shape[0]
    Ho, Wo = H // 2, W // 2
    xp = jnp.pad(x, ((0, 0), (1, 1), (1, 1), (0, 0)), mode="reflect")
    # TODO(synk): im2col patches are still materialized in HBM; building them
    # in-kernel needs manual overlapping-window DMA (memory_space=pl.ANY).
    cols = [xp[:, kh:kh + 2 * Ho:2, kw:kw + 2 * Wo:2, :]
            for kh in range(4) for kw in range(4)]
    a = jnp.concatenate(cols, axis=-1).reshape(N * Ho * Wo, 16 * Cin)
    w2 = w.transpose(2, 3, 1, 0).reshape(16 * Cin, Cout)   # rows = (kh,kw,Cin)
    out = _gemm(a, w2, bias, act=act, gamma=gamma, beta=beta,
                out_dtype=out_dtype)
    return out.reshape(N, Ho, Wo, Cout)


def conv_transpose2d_up(x, w, bias, *, act, out_dtype=jnp.bfloat16):
    """ConvTranspose2d(k=4, s=2, p=1) decomposed into its 4 output parities:
    one GEMM over a 3x3-tap im2col (K=9*Cin) producing 4*Cout lanes, then a
    depth-to-space.  x: (N,H,W,Cin), w: (Cin,Cout,4,4) torch layout."""
    N, H, W, Cin = x.shape
    Cout = w.shape[1]
    xp = jnp.pad(x, ((0, 0), (1, 1), (1, 1), (0, 0)))
    cols = [xp[:, dh:dh + H, dw:dw + W, :]
            for dh in range(3) for dw in range(3)]
    a = jnp.concatenate(cols, axis=-1).reshape(N * H * W, 9 * Cin)
    # Output pixel (2i+ph, 2j+pw) reads taps (dh,dw) in {ph,ph+1}x{pw,pw+1}
    # of the padded input with kernel index k = 3 - 2*d + p.
    wk = jnp.zeros((3, 3, Cin, 2, 2, Cout), jnp.float32)
    for ph in range(2):
        for pw in range(2):
            for dh in (ph, ph + 1):
                for dw in (pw, pw + 1):
                    kh, kw = 3 - 2 * dh + ph, 3 - 2 * dw + pw
                    wk = wk.at[dh, dw, :, ph, pw, :].set(w[:, :, kh, kw])
    w2 = wk.reshape(9 * Cin, 4 * Cout)
    bias4 = jnp.tile(bias, 4)
    out = _gemm(a, w2, bias4, act=act, out_dtype=out_dtype)
    out = out.reshape(N, H, W, 2, 2, Cout).transpose(0, 1, 3, 2, 4, 5)
    return out.reshape(N, 2 * H, 2 * W, Cout)


# ------------------------------- parameters ----------------------------------

def _conv_p(key, cin, cout, transpose):
    k1, k2 = jax.random.split(key)
    shape = (cin, cout, 4, 4) if transpose else (cout, cin, 4, 4)
    return {"w": 0.05 * jax.random.normal(k1, shape, jnp.float32),
            "b": 0.05 * jax.random.normal(k2, (cout,), jnp.float32)}


def _in_p(key, c):
    k1, k2 = jax.random.split(key)
    return {"gamma": 1.0 + 0.05 * jax.random.normal(k1, (c,), jnp.float32),
            "beta": 0.05 * jax.random.normal(k2, (c,), jnp.float32)}


def init_generator_params(key, in_channels, base_channels):
    bc = base_channels
    specs = {  # name: (cin, cout, is_transpose, has_instance_norm)
        "down0": (in_channels, bc, False, False),
        "down1": (bc, bc * 2, False, True),
        "down2": (bc * 2, bc * 4, False, True),
        "down3": (bc * 4, bc * 8, False, True),
        "down4": (bc * 8, bc * 8, False, True),
        "down5": (bc * 8, bc * 8, False, True),
        "down6": (bc * 8, bc * 8, False, True),
        "bottleneck": (bc * 8, bc * 8, False, False),
        "up1": (bc * 8, bc * 8, True, True),
        "up2": (bc * 16, bc * 8, True, True),
        "up3": (bc * 16, bc * 8, True, True),
        "up4": (bc * 16, bc * 8, True, True),
        "up5": (bc * 16, bc * 4, True, True),
        "up6": (bc * 8, bc * 2, True, True),
        "up7": (bc * 4, bc, True, True),
        "up8": (bc * 2, in_channels, True, False),
    }
    params = {}
    for i, (name, (cin, cout, transpose, has_in)) in enumerate(specs.items()):
        k = jax.random.fold_in(key, i)
        p = _conv_p(k, cin, cout, transpose)
        if has_in:
            p.update(_in_p(jax.random.fold_in(k, 777), cout))
        params[name] = p
    return params


# ---------------------------- generator forward ------------------------------

def unet_down(x, p):
    N, H, W, _ = x.shape
    M = N * (H // 2) * (W // 2)
    if N == 1 and M <= _FUSE_MAX_M:
        # InstanceNorm + LeakyReLU fused into the GEMM epilogue.
        return conv2d_down(x, p["w"], p["b"], act="leaky",
                           gamma=p["gamma"], beta=p["beta"])
    y = conv2d_down(x, p["w"], p["b"], act="none")
    return _instance_norm_act(y, p["gamma"], p["beta"], act="leaky")


def unet_up(x, p, *, drop_key=None):
    y = conv_transpose2d_up(x, p["w"], p["b"], act="none")
    mask = None
    if drop_key is not None:
        # TODO(synk): torch.nn.Dropout's RNG stream cannot be reproduced
        # bit-exactly; train-mode dropout (p=0.5, scale 2) uses a jax.random
        # mask applied inside the InstanceNorm kernel.
        keep = jax.random.bernoulli(drop_key, 0.5, y.shape)
        mask = jnp.where(keep, 2.0, 0.0).astype(jnp.bfloat16)
    return _instance_norm_act(y, p["gamma"], p["beta"], act="relu",
                              drop_mask=mask)


def generator_forward(params, x, dropout_key):
    """x: (N, C, H, W) float32 (NCHW, torch convention)."""
    x = x.transpose(0, 2, 3, 1).astype(jnp.bfloat16)        # NHWC bf16
    keys = jax.random.split(dropout_key, 3)

    e1 = conv2d_down(x, params["down0"]["w"], params["down0"]["b"], act="leaky")
    e2 = unet_down(e1, params["down1"])
    e3 = unet_down(e2, params["down2"])
    e4 = unet_down(e3, params["down3"])
    e5 = unet_down(e4, params["down4"])
    e6 = unet_down(e5, params["down5"])
    e7 = unet_down(e6, params["down6"])
    bn = conv2d_down(e7, params["bottleneck"]["w"], params["bottleneck"]["b"],
                     act="relu")
    d7 = unet_up(bn, params["up1"], drop_key=keys[0])
    d6 = unet_up(jnp.concatenate([e7, d7], axis=-1), params["up2"], drop_key=keys[1])
    d5 = unet_up(jnp.concatenate([e6, d6], axis=-1), params["up3"], drop_key=keys[2])
    d4 = unet_up(jnp.concatenate([e5, d5], axis=-1), params["up4"])
    d3 = unet_up(jnp.concatenate([e4, d4], axis=-1), params["up5"])
    d2 = unet_up(jnp.concatenate([e3, d3], axis=-1), params["up6"])
    d1 = unet_up(jnp.concatenate([e2, d2], axis=-1), params["up7"])
    out = conv_transpose2d_up(jnp.concatenate([e1, d1], axis=-1),
                              params["up8"]["w"], params["up8"]["b"],
                              act="tanh", out_dtype=jnp.float32)
    return out.transpose(0, 3, 1, 2)                        # back to NCHW f32


# ------------------------- small correctness checks ---------------------------

def _conv_down_reference(x, w, b):
    xp = jnp.pad(x.astype(jnp.float32), ((0, 0), (1, 1), (1, 1), (0, 0)),
                 mode="reflect")
    N, H, W, _ = x.shape
    Ho, Wo = H // 2, W // 2
    acc = b.astype(jnp.float32)
    for kh in range(4):
        for kw in range(4):
            acc = acc + jnp.einsum(
                "nhwc,dc->nhwd",
                xp[:, kh:kh + 2 * Ho:2, kw:kw + 2 * Wo:2, :],
                w[:, :, kh, kw].astype(jnp.float32))
    return acc


def _conv_up_reference(x, w, b):
    N, H, W, _ = x.shape
    Cout = w.shape[1]
    buf = jnp.zeros((N, 2 * H + 2, 2 * W + 2, Cout), jnp.float32)
    for kh in range(4):
        for kw in range(4):
            c = jnp.einsum("nhwc,cd->nhwd", x.astype(jnp.float32),
                           w[:, :, kh, kw].astype(jnp.float32))
            buf = buf.at[:, kh:kh + 2 * H:2, kw:kw + 2 * W:2, :].add(c)
    return buf[:, 1:2 * H + 1, 1:2 * W + 1, :] + b


def _self_check(key):
    k1, k2, k3, k4 = jax.random.split(key, 4)
    x = jax.random.normal(k1, (2, 8, 8, 6), jnp.float32)
    wd = 0.2 * jax.random.normal(k2, (10, 6, 4, 4), jnp.float32)
    wu = 0.2 * jax.random.normal(k3, (6, 10, 4, 4), jnp.float32)
    b = 0.2 * jax.random.normal(k4, (10,), jnp.float32)
    xb = x.astype(jnp.bfloat16)

    got = conv2d_down(xb, wd, b, act="none", out_dtype=jnp.float32)
    ref = _conv_down_reference(x, wd, b)
    rel = float(jnp.max(jnp.abs(got - ref)) / (jnp.max(jnp.abs(ref)) + 1e-6))
    assert rel < 0.05, f"conv2d_down mismatch: rel err {rel}"

    got = conv_transpose2d_up(xb, wu, b, act="none", out_dtype=jnp.float32)
    ref = _conv_up_reference(x, wu, b)
    rel = float(jnp.max(jnp.abs(got - ref)) / (jnp.max(jnp.abs(ref)) + 1e-6))
    assert rel < 0.05, f"conv_transpose2d_up mismatch: rel err {rel}"


if __name__ == "__main__":
    key = jax.random.PRNGKey(0)
    _self_check(jax.random.fold_in(key, 99))

    in_channels, base_channels = 3, 4       # small channel width
    N, H, W = 1, 256, 256                   # 8 stride-2 stages -> spatial % 256 == 0
    params = init_generator_params(jax.random.fold_in(key, 1),
                                   in_channels, base_channels)
    x = jax.random.normal(jax.random.fold_in(key, 2),
                          (N, in_channels, H, W), jnp.float32)

    fwd = jax.jit(generator_forward)
    y = fwd(params, x, jax.random.fold_in(key, 3))
    y = jax.block_until_ready(y)

    assert y.shape == (N, in_channels, H, W), y.shape
    assert bool(jnp.all(jnp.isfinite(y)))
    assert bool(jnp.all(jnp.abs(y) <= 1.0 + 1e-6))   # tanh output range
    print("KERNEL_OK")
</pallas_src>

<mosaic_0001>
module attributes {stable_mosaic.version = 11 : i64} {
  func.func @_gemm_kernel(%arg0: i32, %arg1: i32, %arg2: memref<32x96xbf16, #tpu.memory_space<vmem>>, %arg3: memref<96x10xbf16, #tpu.memory_space<vmem>>, %arg4: memref<1x10xf32, #tpu.memory_space<vmem>>, %arg5: memref<32x10xf32, #tpu.memory_space<vmem>>, %arg6: memref<32x10xf32, #tpu.memory_space<vmem>>) attributes {dimension_semantics = [#tpu.dimension_semantics<parallel>, #tpu.dimension_semantics<arbitrary>], iteration_bounds = array<i64: 1, 1>, scalar_prefetch = 0 : i64, scratch_operands = 1 : i64, tpu.core_type = #tpu.core_type<tc>, window_params = [{transform_indices = @transform_0, window_bounds = array<i64: 32, 96>}, {transform_indices = @transform_1, window_bounds = array<i64: 96, 10>}, {pipeline_mode = #tpu.pipeline_mode<synchronous>, transform_indices = @transform_2, window_bounds = array<i64: 1, 10>}, {transform_indices = @transform_3, window_bounds = array<i64: 32, 10>}]} {
    %c0_i32 = arith.constant 0 : i32
    %0 = arith.cmpi eq, %arg1, %c0_i32 : i32
    %1 = arith.extui %0 : i1 to i32
    %c0_i32_0 = arith.constant 0 : i32
    %2 = arith.cmpi ne, %1, %c0_i32_0 : i32
    scf.if %2 {
      %cst_10 = arith.constant 0.000000e+00 : f32
      %12 = vector.broadcast %cst_10 : f32 to vector<32x10xf32>
      %c0_11 = arith.constant 0 : index
      %c0_12 = arith.constant 0 : index
      %13 = vector.load %arg6[%c0_11, %c0_12] : memref<32x10xf32, #tpu.memory_space<vmem>>, vector<32x10xf32>
      tpu.vector_store %arg6[%c0_11, %c0_12], %12 {strides = array<i32>} : memref<32x10xf32, #tpu.memory_space<vmem>>, vector<32x10xf32>,
    } else {
    }
    %c0 = arith.constant 0 : index
    %c0_1 = arith.constant 0 : index
    %3 = vector.load %arg6[%c0, %c0_1] : memref<32x10xf32, #tpu.memory_space<vmem>>, vector<32x10xf32>
    %c0_2 = arith.constant 0 : index
    %c0_3 = arith.constant 0 : index
    %4 = vector.load %arg2[%c0_2, %c0_3] : memref<32x96xbf16, #tpu.memory_space<vmem>>, vector<32x96xbf16>
    %c0_4 = arith.constant 0 : index
    %c0_5 = arith.constant 0 : index
    %5 = vector.load %arg3[%c0_4, %c0_5] : memref<96x10xbf16, #tpu.memory_space<vmem>>, vector<96x10xbf16>
    %cst = arith.constant dense<0.000000e+00> : vector<32x10xf32>
    %6 = tpu.matmul %4, %5, %cst {dimension_numbers = #tpu.dot_dimension_numbers<[1], [0], [0], [1], [0, 0, 1, 1], [], []>} : vector<32x96xbf16>, vector<96x10xbf16>, vector<32x10xf32> -> vector<32x10xf32>
    %7 = arith.addf %3, %6 : vector<32x10xf32>
    %c0_6 = arith.constant 0 : index
    %c0_7 = arith.constant 0 : index
    %8 = vector.load %arg6[%c0_6, %c0_7] : memref<32x10xf32, #tpu.memory_space<vmem>>, vector<32x10xf32>
    tpu.vector_store %arg6[%c0_6, %c0_7], %7 {strides = array<i32>} : memref<32x10xf32, #tpu.memory_space<vmem>>, vector<32x10xf32>,
    %c0_i32_8 = arith.constant 0 : i32
    %9 = arith.cmpi eq, %arg1, %c0_i32_8 : i32
    %10 = arith.extui %9 : i1 to i32
    %c0_i32_9 = arith.constant 0 : i32
    %11 = arith.cmpi ne, %10, %c0_i32_9 : i32
    scf.if %11 {
      %c0_10 = arith.constant 0 : index
      %c0_11 = arith.constant 0 : index
      %12 = vector.load %arg6[%c0_10, %c0_11] : memref<32x10xf32, #tpu.memory_space<vmem>>, vector<32x10xf32>
      %c0_12 = arith.constant 0 : index
      %c0_13 = arith.constant 0 : index
      %13 = vector.load %arg4[%c0_12, %c0_13] : memref<1x10xf32, #tpu.memory_space<vmem>>, vector<1x10xf32>
      %14 = vector.broadcast %13 : vector<1x10xf32> to vector<32x10xf32>
      %15 = arith.addf %12, %14 : vector<32x10xf32>
      %c0_14 = arith.constant 0 : index
      %c0_15 = arith.constant 0 : index
      %16 = vector.load %arg5[%c0_14, %c0_15] : memref<32x10xf32, #tpu.memory_space<vmem>>, vector<32x10xf32>
      tpu.vector_store %arg5[%c0_14, %c0_15], %15 {strides = array<i32>} : memref<32x10xf32, #tpu.memory_space<vmem>>, vector<32x10xf32>,
    } else {
    }
    return
  }
  func.func @transform_0(%arg0: i32, %arg1: i32) -> (i32, i32) {
    %c0_i32 = arith.constant 0 : i32
    return %arg0, %arg1 : i32, i32
  }
  func.func @transform_1(%arg0: i32, %arg1: i32) -> (i32, i32) {
    %c0_i32 = arith.constant 0 : i32
    %c0_i32_0 = arith.constant 0 : i32
    return %arg1, %c0_i32 : i32, i32
  }
  func.func @transform_2(%arg0: i32, %arg1: i32) -> (i32, i32) {
    %c0_i32 = arith.constant 0 : i32
    %c0_i32_0 = arith.constant 0 : i32
    %c0_i32_1 = arith.constant 0 : i32
    return %c0_i32, %c0_i32_0 : i32, i32
  }
  func.func @transform_3(%arg0: i32, %arg1: i32) -> (i32, i32) {
    %c0_i32 = arith.constant 0 : i32
    %c0_i32_0 = arith.constant 0 : i32
    return %arg0, %c0_i32 : i32, i32
  }
}

</mosaic_0001>

<llo_original>
// kernel: tpu_custom_call.1
$region0: #{tpu_custom_call.1}
  #allocation0 [shape = 'u32[]', space=smem, size = 0x4, offset = 0x4, fixed_abs, tag = 'smem constant byte address 0x4 - core index']
  #allocation1 [shape = 'u32[144,128]{1,0:T(1,128)}', space=vmem, size = 0x12000, scoped, tag = 'internal scratch']
  #allocation2 [shape = 'f32[32,10]{1,0:T(8,128)}', space=vmem, size = 0x4000, scoped, tag = 'scratch operand']
  %s0 = inlined_call_operand.vmem [shape: bf16[32,96], index: 0, kind: input, shape index: {}]
  %s1 = inlined_call_operand.vmem [shape: bf16[96,10], index: 1, kind: input, shape index: {}]
  %s2 = inlined_call_operand.vmem [shape: f32[1,10], index: 2, kind: input, shape index: {}]
  %s3 = inlined_call_operand.vmem [shape: f32[32,10], index: 3, kind: output, shape index: {}]
  %s4 = sld [smem:[#allocation0]]
  $region30: #{tpu_custom_call.1} parent=0
    _
  %s6 = ssub.s32 1, %s4
  %s7 = scalar_select 0, %s6, %s4
  // Predicated region
  $region2: #{tpu_custom_call.1} parent=0 // pred_check
    _
  $region3: #{tpu_custom_call.1} parent=0 // pred_check_branch
    %9 = sbr.rel (0) target = $region5
  $region4: #{tpu_custom_call.1} parent=0 // pred_region
    _
  $region5: #{tpu_custom_call.1} parent=0 // pred_fallthru
    _
  // Predicated region
  $region6: #{tpu_custom_call.1} parent=0 // pred_check
    _
  $region7: #{tpu_custom_call.1} parent=0 // pred_check_branch
    %11 = sbr.rel (0) target = $region9
  $region8: #{tpu_custom_call.1} parent=0 // pred_region
    _
  $region9: #{tpu_custom_call.1} parent=0 // pred_fallthru
    _
  // Predicated region
  $region10: #{tpu_custom_call.1} parent=0 // pred_check
    _
  $region11: #{tpu_custom_call.1} parent=0 // pred_check_branch
    %13 = sbr.rel (0) target = $region13
  $region12: #{tpu_custom_call.1} parent=0 // pred_region
    _
  $region13: #{tpu_custom_call.1} parent=0 // pred_fallthru
    _
  %p15 = scmp.eq.s32.totalorder 0, 0
  // Predicated region
  $region14: #{tpu_custom_call.1} parent=0 // pred_check
    %p16 = pneg %p15
  $region15: #{tpu_custom_call.1} parent=0 // pred_check_branch
    %18 = sbr.rel (%p16) target = $region17
  $region16: #{tpu_custom_call.1} parent=0 // pred_region
    %vm19 = vcmask 80896
    %20 = vst.msk [vmem:[#allocation2] sm:$0xff] %vm19, 0.0
    %21 = vst.msk [vmem:[#allocation2 + $0x8] sm:$0xff] %vm19, 0.0
    %22 = vst.msk [vmem:[#allocation2 + $0x10] sm:$0xff] %vm19, 0.0
    %23 = vst.msk [vmem:[#allocation2 + $0x18] sm:$0xff] %vm19, 0.0
  $region17: #{tpu_custom_call.1} parent=0 // pred_fallthru
    _
  %v24 = vld [vmem:[#allocation2] sm:$0xff]
  %v25 = vld [vmem:[#allocation2 + $0x8] sm:$0xff]
  %v26 = vld [vmem:[#allocation2 + $0x10] sm:$0xff]
  %v27 = vld [vmem:[#allocation2 + $0x18] sm:$0xff]
  %v28 = vld [vmem:[%s0] sm:$0xf]
  %v29 = vld [vmem:[%s0 + $0x4] sm:$0xf]
  %v30 = vld [vmem:[%s0 + $0x8] sm:$0xf]
  %v31 = vld [vmem:[%s0 + $0xc] sm:$0xf]
  %v32 = vld [vmem:[%s1] sm:$0xf]
  %v33 = vld [vmem:[%s1 + $0x4] sm:$0xf]
  %v34 = vld [vmem:[%s1 + $0x8] sm:$0xf]
  %v35 = vld [vmem:[%s1 + $0xc] sm:$0xf]
  %v36 = vld [vmem:[%s1 + $0x10] sm:$0xf]
  %v37 = vld [vmem:[%s1 + $0x14] sm:$0xf]
  %v38 = vld [vmem:[%s1 + $0x18] sm:$0xf]
  %v39 = vld [vmem:[%s1 + $0x1c] sm:$0xf]
  %v40 = vld [vmem:[%s1 + $0x20] sm:$0xf]
  %v41 = vld [vmem:[%s1 + $0x24] sm:$0xf]
  %v42 = vld [vmem:[%s1 + $0x28] sm:$0xf]
  %v43 = vld [vmem:[%s1 + $0x2c] sm:$0xf]
  %v48 = vunpack.c.l.b16 %v28
  %v49 = vunpack.c.l.b16 %v29
  %v50 = vunpack.c.l.b16 %v30
  %v51 = vunpack.c.l.b16 %v31
  %v52 = vpack.c.b16 %v49, %v48
  %v53 = vpack.c.b16 %v51, %v50
  %v66 = vunpack.c.l.b16 %v32
  %v67 = vunpack.c.l.b16 %v33
  %v68 = vunpack.c.l.b16 %v34
  %v69 = vunpack.c.l.b16 %v35
  %v70 = vunpack.c.l.b16 %v36
  %v71 = vunpack.c.l.b16 %v37
  %v72 = vunpack.c.l.b16 %v38
  %v73 = vunpack.c.l.b16 %v39
  %v74 = vunpack.c.l.b16 %v40
  %v75 = vunpack.c.l.b16 %v41
  %v76 = vunpack.c.l.b16 %v42
  %v77 = vunpack.c.l.b16 %v43
  %v78 = vpack.c.b16 %v67, %v66
  %v79 = vpack.c.b16 %v69, %v68
  %v80 = vpack.c.b16 %v71, %v70
  %v81 = vpack.c.b16 %v73, %v72
  %v82 = vpack.c.b16 %v75, %v74
  %v83 = vpack.c.b16 %v77, %v76
  %vm90 = vcmask 785408
  %v92 = vsel %vm90, %v52, 0
  %v95 = vsel %vm90, %v53, 0
  %97 = vmatprep.subr.bf16.mxu0 0
  %98 = vmatpush1.bf16.msra.mxu0 %v78
  %99 = vmatprep.subr.bf16.mxu0 0
  %100 = vmatpush1.bf16.msra.mxu0 %v79
  %101 = vmatprep.subr.bf16.mxu0 0
  %102 = vmatpush1.bf16.msra.mxu0 %v80
  %103 = vmatprep.subr.bf16.mxu0 0
  %104 = vmatpush1.bf16.msra.mxu0 %v81
  %105 = vmatprep.subr.bf16.mxu0 0
  %106 = vmatpush1.bf16.msra.mxu0 %v82
  %107 = vmatprep.subr.bf16.mxu0 0
  %108 = vmatpush1.bf16.msra.mxu0 %v83
  %109 = vmatprep.subr.bf16.mxu0 0
  %110 = vmatpush1.bf16.msra.mxu0 0
  %111 = vmatprep.subr.bf16.mxu0 0
  %112 = vmatpush1.bf16.msra.mxu0 0
  %113 = vmatprep.subr.bf16.mxu0 0
  %114 = vmatpush1.bf16.msra.mxu0 0
  %115 = vmatprep.subr.bf16.mxu0 0
  %116 = vmatpush1.bf16.msra.mxu0 0
  %117 = vmatprep.subr.bf16.mxu0 0
  %118 = vmatpush1.bf16.msra.mxu0 0
  %119 = vmatprep.subr.bf16.mxu0 0
  %120 = vmatpush1.bf16.msra.mxu0 0
  %121 = vmatprep.subr.bf16.mxu0 0
  %122 = vmatpush1.bf16.msra.mxu0 0
  %123 = vmatprep.subr.bf16.mxu0 0
  %124 = vmatpush1.bf16.msra.mxu0 0
  %125 = vmatprep.subr.bf16.mxu0 0
  %126 = vmatpush1.bf16.msra.mxu0 0
  %127 = vmatprep.subr.bf16.mxu0 0
  %128 = vmatpush1.bf16.msra.mxu0 0
  %129 = vmatprep.mubr.bf16.mxu0 0
  %130 = vmatmul.mubr.bf16.gmra.mrb[0].mxu0 %v92
  %v131 = vpop.f32.mrb[0].mxu0
  %v132 = vadd.f32 0.0, %v131
  %v133 = vpop.f32.mrb[0].mxu0
  %v134 = vpop.f32.mrb[0].mxu0
  %v135 = vadd.f32 0.0, %v134
  %v136 = vpop.f32.mrb[0].mxu0
  %137 = vmatprep.mubr.bf16.mxu0 0
  %138 = vmatmul.mubr.bf16.gmra.mrb[0].mxu0 %v95
  %v139 = vpop.f32.mrb[0].mxu0
  %v140 = vadd.f32 0.0, %v139
  %v141 = vpop.f32.mrb[0].mxu0
  %v142 = vpop.f32.mrb[0].mxu0
  %v143 = vadd.f32 0.0, %v142
  %v144 = vpop.f32.mrb[0].mxu0
  %145 = vdwg.mxu0
  %v146 = vadd.f32 %v24, %v132
  %v147 = vadd.f32 %v25, %v135
  %v148 = vadd.f32 %v26, %v140
  %v149 = vadd.f32 %v27, %v143
  %vm150 = vcmask 80896
  %151 = vst.msk [vmem:[#allocation2] sm:$0xff] %vm150, %v146
  %152 = vst.msk [vmem:[#allocation2 + $0x8] sm:$0xff] %vm150, %v147
  %153 = vst.msk [vmem:[#allocation2 + $0x10] sm:$0xff] %vm150, %v148
  %154 = vst.msk [vmem:[#allocation2 + $0x18] sm:$0xff] %vm150, %v149
  // Predicated region
  $region18: #{tpu_custom_call.1} parent=0 // pred_check
    %p155 = pneg %p15
  $region19: #{tpu_custom_call.1} parent=0 // pred_check_branch
    %157 = sbr.rel (%p155) target = $region21
  $region20: #{tpu_custom_call.1} parent=0 // pred_region
    %v158 = vld [vmem:[#allocation2] sm:$0xff]
    %v159 = vld [vmem:[#allocation2 + $0x8] sm:$0xff]
    %v160 = vld [vmem:[#allocation2 + $0x10] sm:$0xff]
    %v161 = vld [vmem:[#allocation2 + $0x18] sm:$0xff]
    %v162 = vld [vmem:[%s2] sm:$0x1]
    %v164 = vlaneseq
    %v165 = vshrl.u32 %v164, 7
    %v166 = vsub.s32 0, %v165
    %v167 = vrot.slane %v162, %v166
    %v169 = vadd.f32 %v158, %v167
    %v170 = vadd.f32 %v159, %v167
    %v171 = vadd.f32 %v160, %v167
    %v172 = vadd.f32 %v161, %v167
    %173 = vst.msk [vmem:[%s3] sm:$0xff] %vm150, %v169
    %174 = vst.msk [vmem:[%s3 + $0x8] sm:$0xff] %vm150, %v170
    %175 = vst.msk [vmem:[%s3 + $0x10] sm:$0xff] %vm150, %v171
    %176 = vst.msk [vmem:[%s3 + $0x18] sm:$0xff] %vm150, %v172
  $region21: #{tpu_custom_call.1} parent=0 // pred_fallthru
    _
  // Predicated region
  $region22: #{tpu_custom_call.1} parent=0 // pred_check
    _
  $region23: #{tpu_custom_call.1} parent=0 // pred_check_branch
    %178 = sbr.rel (0) target = $region25
  $region24: #{tpu_custom_call.1} parent=0 // pred_region
    _
  $region25: #{tpu_custom_call.1} parent=0 // pred_fallthru
    _
  // Predicated region
  $region26: #{tpu_custom_call.1} parent=0 // pred_check
    _
  $region27: #{tpu_custom_call.1} parent=0 // pred_check_branch
    %180 = sbr.rel (0) target = $region29
  $region28: #{tpu_custom_call.1} parent=0 // pred_region
    _
  $region29: #{tpu_custom_call.1} parent=0 // pred_fallthru
    _

</llo_original>
